<compile_context>
chip_gen: v5e
topology: v5e:2x2
jax: 0.10.0
libtpu: 0.0.40
codegen_flags: <defaults>
</compile_context>

<pallas_src>
import functools
import math

import jax
import jax.numpy as jnp
from jax import lax
from jax.experimental import pallas as pl
from jax.experimental.pallas import tpu as pltpu


def _round_up(x, m):
    return ((x + m - 1) // m) * m


def _split_linear_kernel(x_ref, w_ref, b_ref, o_ref, *, hp, precision):
    # x_ref: (TN, 2*Hp) one row tile of x, both feature halves side by side
    # w_ref: (Hp, Hp)   torch-layout weight; contract on its LAST dim (y = x@W^T)
    # b_ref: (1, Hp)    f32 bias (broadcast over rows)
    # o_ref: (TN, 2*Hp)
    w = w_ref[...]
    b = b_ref[...]
    dn = (((1,), (1,)), ((), ()))

    # First half (lane-aligned slice: hp is a multiple of 128 -> no relayout).
    z1 = lax.dot_general(x_ref[:, :hp], w, dimension_numbers=dn,
                         preferred_element_type=jnp.float32, precision=precision)
    o_ref[:, :hp] = jnp.maximum(z1 + b, 0.0).astype(o_ref.dtype)

    # Second half (same weight, same bias).
    z2 = lax.dot_general(x_ref[:, hp:], w, dimension_numbers=dn,
                         preferred_element_type=jnp.float32, precision=precision)
    o_ref[:, hp:] = jnp.maximum(z2 + b, 0.0).astype(o_ref.dtype)


def split_linear_forward(x, w, b, *, row_tile=512, compute_dtype=None):
    """SplitLinear forward.

    x: (N, M) activations, w: (H, H) torch nn.Linear weight with H = M // 2,
    b: (H,) bias.  Returns concat(relu(x[:, :H] @ W^T + b),
                                  relu(x[:, H:] @ W^T + b)) along dim 1.
    `compute_dtype=jnp.bfloat16` is the throughput path (f32 accumulation).
    """
    N, M = x.shape
    assert M % 2 == 0, "M (feature count) must be even"
    H = M // 2
    assert w.shape == (H, H) and b.shape == (H,)

    out_dtype = x.dtype
    if compute_dtype is not None:
        # Boundary cast: bf16 activations/weights through the MXU, f32 acc.
        x = x.astype(compute_dtype)
        w = w.astype(compute_dtype)
        precision = None                       # native low-precision inputs
    else:
        # Faithful f32 semantics (matches PyTorch float32 Linear).
        precision = lax.Precision.HIGHEST

    # ---- pad to TPU-friendly shapes only when needed ------------------------
    Hp = _round_up(H, 128)                     # lane-aligned feature half
    TN = min(row_tile, _round_up(N, 8))        # sublane-aligned row tile
    Np = _round_up(N, TN)                      # grid rows * TN

    if Hp != H:
        # One-time zero-pad pass; only taken for unaligned H (e.g. demo H=16).
        xp = jnp.zeros((Np, 2 * Hp), x.dtype)
        xp = xp.at[:N, :H].set(x[:, :H]).at[:N, Hp:Hp + H].set(x[:, H:])
        wp = jnp.zeros((Hp, Hp), w.dtype).at[:H, :H].set(w)
        bp = jnp.zeros((1, Hp), jnp.float32).at[0, :H].set(b.astype(jnp.float32))
    else:
        xp = x if Np == N else jnp.pad(x, ((0, Np - N), (0, 0)))
        wp = w
        bp = b.astype(jnp.float32).reshape(1, Hp)

    grid = (Np // TN,)                         # row tiles only; both halves per step

    # VMEM budget: double-buffered x/out row slabs + resident weight + bias.
    est_vmem = (2 * TN * 2 * Hp * jnp.dtype(xp.dtype).itemsize
                + 2 * TN * 2 * Hp * jnp.dtype(out_dtype).itemsize
                + 2 * Hp * Hp * jnp.dtype(wp.dtype).itemsize
                + 2 * Hp * 4)
    vmem_limit = min(100 * 1024 * 1024, max(32 * 1024 * 1024, int(1.5 * est_vmem)))
    # TODO(synk): for very large H (weight alone exceeding VMEM, e.g. H>=4096
    # f32 on v7x's 64 MiB), add a K-tiling grid axis with an f32 VMEM
    # accumulator and pl.when init/finalize (standard P3 matmul pattern).

    out = pl.pallas_call(
        functools.partial(_split_linear_kernel, hp=Hp, precision=precision),
        out_shape=jax.ShapeDtypeStruct((Np, 2 * Hp), out_dtype),
        grid=grid,
        in_specs=[
            pl.BlockSpec((TN, 2 * Hp), lambda n: (n, 0)),  # contiguous row slab
            pl.BlockSpec((Hp, Hp), lambda n: (0, 0)),      # weight: VMEM-resident
            pl.BlockSpec((1, Hp), lambda n: (0, 0)),       # bias
        ],
        out_specs=pl.BlockSpec((TN, 2 * Hp), lambda n: (n, 0)),
        compiler_params=pltpu.CompilerParams(
            dimension_semantics=("parallel",),
            vmem_limit_bytes=vmem_limit,
        ),
    )(xp, wp, bp)

    if Hp != H:
        return jnp.concatenate([out[:N, :H], out[:N, Hp:Hp + H]], axis=1)
    return out[:N] if Np != N else out


def _reference(x, w, b):
    """Pure-JAX reference of the exact PyTorch forward (f32, highest precision)."""
    H = w.shape[0]
    r1 = jnp.maximum(jnp.dot(x[:, :H], w.T, precision=lax.Precision.HIGHEST) + b, 0.0)
    r2 = jnp.maximum(jnp.dot(x[:, H:], w.T, precision=lax.Precision.HIGHEST) + b, 0.0)
    return jnp.concatenate([r1, r2], axis=1)


if __name__ == "__main__":
    # --- primary demo: small shapes consistent with the module ---------------
    N, M = 8, 32
    H = M // 2
    kx, kw, kb = jax.random.split(jax.random.PRNGKey(0), 3)
    bound = 1.0 / math.sqrt(H)
    x = jax.random.normal(kx, (N, M), dtype=jnp.float32)
    # Mirrors torch.nn.init.uniform_(weight, -bound, bound) and default bias init.
    w = jax.random.uniform(kw, (H, H), minval=-bound, maxval=bound, dtype=jnp.float32)
    b = jax.random.uniform(kb, (H,), minval=-bound, maxval=bound, dtype=jnp.float32)

    y = split_linear_forward(x, w, b)
    jax.block_until_ready(y)
    assert y.shape == (N, M)
    assert jnp.allclose(y, _reference(x, w, b), atol=1e-5, rtol=1e-5)

    # --- lane-aligned shapes: exercises the no-padding fast path + bf16 ------
    N2, M2 = 256, 256
    H2 = M2 // 2
    kx2, kw2, kb2 = jax.random.split(jax.random.PRNGKey(1), 3)
    bound2 = 1.0 / math.sqrt(H2)
    x2 = jax.random.normal(kx2, (N2, M2), dtype=jnp.float32)
    w2 = jax.random.uniform(kw2, (H2, H2), minval=-bound2, maxval=bound2, dtype=jnp.float32)
    b2 = jax.random.uniform(kb2, (H2,), minval=-bound2, maxval=bound2, dtype=jnp.float32)
    y2_ref = _reference(x2, w2, b2)

    y2 = split_linear_forward(x2, w2, b2)
    jax.block_until_ready(y2)
    assert jnp.allclose(y2, y2_ref, atol=1e-4, rtol=1e-4)

    y2_bf16 = split_linear_forward(x2, w2, b2, compute_dtype=jnp.bfloat16)
    jax.block_until_ready(y2_bf16)
    assert jnp.allclose(y2_bf16.astype(jnp.float32), y2_ref, atol=5e-2, rtol=5e-2)

    print("KERNEL_OK")
</pallas_src>

<mosaic_0001>
module attributes {stable_mosaic.version = 11 : i64} {
  func.func @_split_linear_kernel(%arg0: i32, %arg1: memref<8x256xf32, #tpu.memory_space<vmem>>, %arg2: memref<128x128xf32, #tpu.memory_space<vmem>>, %arg3: memref<1x128xf32, #tpu.memory_space<vmem>>, %arg4: memref<8x256xf32, #tpu.memory_space<vmem>>) attributes {dimension_semantics = [#tpu.dimension_semantics<parallel>], iteration_bounds = array<i64: 1>, scalar_prefetch = 0 : i64, scratch_operands = 0 : i64, tpu.core_type = #tpu.core_type<tc>, window_params = [{transform_indices = @transform_0, window_bounds = array<i64: 8, 256>}, {pipeline_mode = #tpu.pipeline_mode<synchronous>, transform_indices = @transform_1, window_bounds = array<i64: 128, 128>}, {pipeline_mode = #tpu.pipeline_mode<synchronous>, transform_indices = @transform_2, window_bounds = array<i64: 1, 128>}, {transform_indices = @transform_3, window_bounds = array<i64: 8, 256>}]} {
    %c0 = arith.constant 0 : index
    %c0_0 = arith.constant 0 : index
    %0 = vector.load %arg2[%c0, %c0_0] : memref<128x128xf32, #tpu.memory_space<vmem>>, vector<128x128xf32>
    %c0_1 = arith.constant 0 : index
    %c0_2 = arith.constant 0 : index
    %1 = vector.load %arg3[%c0_1, %c0_2] : memref<1x128xf32, #tpu.memory_space<vmem>>, vector<1x128xf32>
    %c0_3 = arith.constant 0 : index
    %c0_4 = arith.constant 0 : index
    %2 = vector.load %arg1[%c0_3, %c0_4] : memref<8x256xf32, #tpu.memory_space<vmem>>, vector<8x128xf32>
    %cst = arith.constant dense<0.000000e+00> : vector<8x128xf32>
    %3 = tpu.matmul %2, %0, %cst {dimension_numbers = #tpu.dot_dimension_numbers<[1], [1], [0], [0], [0, 0, 1, 0], [], []>, precision = #tpu.contract_precision<fp32>} : vector<8x128xf32>, vector<128x128xf32>, vector<8x128xf32> -> vector<8x128xf32>
    %4 = vector.broadcast %1 : vector<1x128xf32> to vector<8x128xf32>
    %5 = arith.addf %3, %4 : vector<8x128xf32>
    %cst_5 = arith.constant 0.000000e+00 : f32
    %6 = vector.broadcast %cst_5 : f32 to vector<8x128xf32>
    %7 = arith.maximumf %5, %6 : vector<8x128xf32>
    %c0_6 = arith.constant 0 : index
    %c0_7 = arith.constant 0 : index
    %8 = vector.load %arg4[%c0_6, %c0_7] : memref<8x256xf32, #tpu.memory_space<vmem>>, vector<8x128xf32>
    tpu.vector_store %arg4[%c0_6, %c0_7], %7 {strides = array<i32>} : memref<8x256xf32, #tpu.memory_space<vmem>>, vector<8x128xf32>,
    %c0_8 = arith.constant 0 : index
    %c128 = arith.constant 128 : index
    %9 = vector.load %arg1[%c0_8, %c128] : memref<8x256xf32, #tpu.memory_space<vmem>>, vector<8x128xf32>
    %cst_9 = arith.constant dense<0.000000e+00> : vector<8x128xf32>
    %10 = tpu.matmul %9, %0, %cst_9 {dimension_numbers = #tpu.dot_dimension_numbers<[1], [1], [0], [0], [0, 0, 1, 0], [], []>, precision = #tpu.contract_precision<fp32>} : vector<8x128xf32>, vector<128x128xf32>, vector<8x128xf32> -> vector<8x128xf32>
    %11 = vector.broadcast %1 : vector<1x128xf32> to vector<8x128xf32>
    %12 = arith.addf %10, %11 : vector<8x128xf32>
    %cst_10 = arith.constant 0.000000e+00 : f32
    %13 = vector.broadcast %cst_10 : f32 to vector<8x128xf32>
    %14 = arith.maximumf %12, %13 : vector<8x128xf32>
    %c0_11 = arith.constant 0 : index
    %c128_12 = arith.constant 128 : index
    %15 = vector.load %arg4[%c0_11, %c128_12] : memref<8x256xf32, #tpu.memory_space<vmem>>, vector<8x128xf32>
    tpu.vector_store %arg4[%c0_11, %c128_12], %14 {strides = array<i32>} : memref<8x256xf32, #tpu.memory_space<vmem>>, vector<8x128xf32>,
    return
  }
  func.func @transform_0(%arg0: i32) -> (i32, i32) {
    %c0_i32 = arith.constant 0 : i32
    %c0_i32_0 = arith.constant 0 : i32
    return %arg0, %c0_i32 : i32, i32
  }
  func.func @transform_1(%arg0: i32) -> (i32, i32) {
    %c0_i32 = arith.constant 0 : i32
    %c0_i32_0 = arith.constant 0 : i32
    %c0_i32_1 = arith.constant 0 : i32
    return %c0_i32, %c0_i32_0 : i32, i32
  }
  func.func @transform_2(%arg0: i32) -> (i32, i32) {
    %c0_i32 = arith.constant 0 : i32
    %c0_i32_0 = arith.constant 0 : i32
    %c0_i32_1 = arith.constant 0 : i32
    return %c0_i32, %c0_i32_0 : i32, i32
  }
  func.func @transform_3(%arg0: i32) -> (i32, i32) {
    %c0_i32 = arith.constant 0 : i32
    %c0_i32_0 = arith.constant 0 : i32
    return %arg0, %c0_i32 : i32, i32
  }
}

</mosaic_0001>

<llo_original>
// kernel: tpu_custom_call.1
$region0: #{tpu_custom_call.1}
  #allocation0 [shape = 'u32[]', space=smem, size = 0x4, offset = 0x4, fixed_abs, tag = 'smem constant byte address 0x4 - core index']
  #allocation1 [shape = 'u32[72,128]{1,0:T(1,128)}', space=vmem, size = 0x9000, scoped, tag = 'internal scratch']
  %s0 = inlined_call_operand.hbm [shape: f32[8,256], index: 0, kind: input, shape index: {}]
  %s1 = inlined_call_operand.hbm [shape: f32[128,128], index: 1, kind: input, shape index: {}]
  %s2 = inlined_call_operand.vmem [shape: f32[1,128], index: 2, kind: input, shape index: {}]
  %s3 = inlined_call_operand.hbm [shape: f32[8,256], index: 3, kind: output, shape index: {}]
  %s4 = sld [smem:[#allocation0]]
  $region30: #{tpu_custom_call.1} parent=0
    _
  %s6 = ssub.s32 1, %s4
  %s7 = scalar_select 0, %s6, %s4
  $region1: #{tpu_custom_call.1} parent=0
    #allocation2 [shape = 'u8[8192]{0}', space=vmem, size = 0x2000, scoped, tag = 'input window, operand 0, single buffered']
    #allocation3 [shape = 's32[1]{0}', space=sflag, size = 0x4, scoped, tag = 'scoped memory for tpu_custom_call.1']
    #allocation4 [shape = 's32[1]{0}', space=sflag, size = 0x4, scoped, tag = 'scoped memory for tpu_custom_call.1']
    #allocation5 [shape = 'u8[65536]{0}', space=vmem, size = 0x10000, scoped, tag = 'input window, operand 1, single buffered']
    #allocation6 [shape = 's32[1]{0}', space=sflag, size = 0x4, scoped, tag = 'scoped memory for tpu_custom_call.1']
    #allocation7 [shape = 'u8[8192]{0}', space=vmem, size = 0x2000, scoped, tag = 'output window, operand 0, single buffered']
    %8 = vsyncpa [#allocation3], 0
    %9 = vsyncpa [#allocation6], 0
    %10 = vsyncpa [#allocation4], 0
    // Predicated region
    $region2: #{tpu_custom_call.1} parent=1 // pred_check
      _
    $region3: #{tpu_custom_call.1} parent=1 // pred_check_branch
      %12 = sbr.rel (0) target = $region5
    $region4: #{tpu_custom_call.1} parent=1 // pred_region
      %14 = vsyncadd [#allocation3], 0
      %s16 = sshll.u32 %s0, 4
      %s17 = int_to_ptr.hbm [resolvable:$true] %s16
      %s18 = sshll.u32 [#allocation2], 4
      %s19 = int_to_ptr.vmem [resolvable:$true] %s18
      %21 = dma.hbm_to_vmem [thread:$0]  %s17, 256, %s19, [#allocation3]
    $region5: #{tpu_custom_call.1} parent=1 // pred_fallthru
      _
    // Predicated region
    $region6: #{tpu_custom_call.1} parent=1 // pred_check
      _
    $region7: #{tpu_custom_call.1} parent=1 // pred_check_branch
      %23 = sbr.rel (0) target = $region9
    $region8: #{tpu_custom_call.1} parent=1 // pred_region
      %25 = vsyncadd [#allocation6], 0
      %s26 = sshll.u32 %s1, 4
      %s27 = int_to_ptr.hbm [resolvable:$true] %s26
      %s28 = sshll.u32 [#allocation5], 4
      %s29 = int_to_ptr.vmem [resolvable:$true] %s28
      %34 = dma.hbm_to_vmem [thread:$0]  %s27, 2048, %s29, [#allocation6], 128, 128, 8
    $region9: #{tpu_custom_call.1} parent=1 // pred_fallthru
      _
    // Predicated region
    $region10: #{tpu_custom_call.1} parent=1 // pred_check
      _
    $region11: #{tpu_custom_call.1} parent=1 // pred_check_branch
      %36 = sbr.rel (0) target = $region13
    $region12: #{tpu_custom_call.1} parent=1 // pred_region
      _
    $region13: #{tpu_custom_call.1} parent=1 // pred_fallthru
      _
    // Predicated region
    $region14: #{tpu_custom_call.1} parent=1 // pred_check
      _
    $region15: #{tpu_custom_call.1} parent=1 // pred_check_branch
      %38 = sbr.rel (0) target = $region17
    $region16: #{tpu_custom_call.1} parent=1 // pred_region
      %40 = dma.done [#allocation3], 256
    $region17: #{tpu_custom_call.1} parent=1 // pred_fallthru
      _
    // Predicated region
    $region18: #{tpu_custom_call.1} parent=1 // pred_check
      _
    $region19: #{tpu_custom_call.1} parent=1 // pred_check_branch
      %42 = sbr.rel (0) target = $region21
    $region20: #{tpu_custom_call.1} parent=1 // pred_region
      %44 = dma.done [#allocation6], 2048
    $region21: #{tpu_custom_call.1} parent=1 // pred_fallthru
      _
    %v45 = vld [vmem:[#allocation5] sm:$0xff]
    %v46 = vld [vmem:[#allocation5 + $0x8] sm:$0xff]
    %v47 = vld [vmem:[#allocation5 + $0x10] sm:$0xff]
    %v48 = vld [vmem:[#allocation5 + $0x18] sm:$0xff]
    %v49 = vld [vmem:[#allocation5 + $0x20] sm:$0xff]
    %v50 = vld [vmem:[#allocation5 + $0x28] sm:$0xff]
    %v51 = vld [vmem:[#allocation5 + $0x30] sm:$0xff]
    %v52 = vld [vmem:[#allocation5 + $0x38] sm:$0xff]
    %v53 = vld [vmem:[#allocation5 + $0x40] sm:$0xff]
    %v54 = vld [vmem:[#allocation5 + $0x48] sm:$0xff]
    %v55 = vld [vmem:[#allocation5 + $0x50] sm:$0xff]
    %v56 = vld [vmem:[#allocation5 + $0x58] sm:$0xff]
    %v57 = vld [vmem:[#allocation5 + $0x60] sm:$0xff]
    %v58 = vld [vmem:[#allocation5 + $0x68] sm:$0xff]
    %v59 = vld [vmem:[#allocation5 + $0x70] sm:$0xff]
    %v60 = vld [vmem:[#allocation5 + $0x78] sm:$0xff]
    %v61 = vld [vmem:[%s2] sm:$0x1]
    %v62 = vld [vmem:[#allocation2] sm:$0xff]
    %v64 = vperm.slane %v61, 0
    %v66 = vand.u32 %v60, 4294901760
    %67 = vmatpush.xpose.msra.mxu0 %v66
    %v68 = vand.u32 %v59, 4294901760
    %69 = vmatpush.xpose.msra.mxu0 %v68
    %v70 = vand.u32 %v58, 4294901760
    %71 = vmatpush.xpose.msra.mxu0 %v70
    %v72 = vand.u32 %v57, 4294901760
    %73 = vmatpush.xpose.msra.mxu0 %v72
    %v74 = vand.u32 %v56, 4294901760
    %75 = vmatpush.xpose.msra.mxu0 %v74
    %v76 = vand.u32 %v55, 4294901760
    %77 = vmatpush.xpose.msra.mxu0 %v76
    %v78 = vand.u32 %v54, 4294901760
    %79 = vmatpush.xpose.msra.mxu0 %v78
    %v80 = vand.u32 %v53, 4294901760
    %81 = vmatpush.xpose.msra.mxu0 %v80
    %v82 = vand.u32 %v52, 4294901760
    %83 = vmatpush.xpose.msra.mxu0 %v82
    %v84 = vand.u32 %v51, 4294901760
    %85 = vmatpush.xpose.msra.mxu0 %v84
    %v86 = vand.u32 %v50, 4294901760
    %87 = vmatpush.xpose.msra.mxu0 %v86
    %v88 = vand.u32 %v49, 4294901760
    %89 = vmatpush.xpose.msra.mxu0 %v88
    %v90 = vand.u32 %v48, 4294901760
    %91 = vmatpush.xpose.msra.mxu0 %v90
    %v92 = vand.u32 %v47, 4294901760
    %93 = vmatpush.xpose.msra.mxu0 %v92
    %v94 = vand.u32 %v46, 4294901760
    %95 = vmatpush.xpose.msra.mxu0 %v94
    %v96 = vand.u32 %v45, 4294901760
    %97 = vmatpush.xpose.msra.mxu0 %v96
    %v98 = vand.u32 %v62, 4294901760
    %v99 = vsub.f32 %v62, %v98
    %v100 = vand.u32 %v99, 4294901760
    %v101 = vsub.f32 %v99, %v100
    %v102 = vand.u32 %v101, 4294901760
    %103 = vmatmul.f32.gmra.mxu0 %v102
    %v104 = vpop.f32.mrf.mxu0
    %v105 = vadd.f32 %v64, %v104
    %106 = vdwg.mxu0
    %v107 = vand.u32 %v60, 4294901760
    %v108 = vsub.f32 %v60, %v107
    %v109 = vand.u32 %v108, 4294901760
    %v110 = vsub.f32 %v108, %v109
    %v111 = vand.u32 %v110, 4294901760
    %112 = vmatpush.xpose.msra.mxu0 %v111
    %v113 = vand.u32 %v59, 4294901760
    %v114 = vsub.f32 %v59, %v113
    %v115 = vand.u32 %v114, 4294901760
    %v116 = vsub.f32 %v114, %v115
    %v117 = vand.u32 %v116, 4294901760
    %118 = vmatpush.xpose.msra.mxu0 %v117
    %v119 = vand.u32 %v58, 4294901760
    %v120 = vsub.f32 %v58, %v119
    %v121 = vand.u32 %v120, 4294901760
    %v122 = vsub.f32 %v120, %v121
    %v123 = vand.u32 %v122, 4294901760
    %124 = vmatpush.xpose.msra.mxu0 %v123
    %v125 = vand.u32 %v57, 4294901760
    %v126 = vsub.f32 %v57, %v125
    %v127 = vand.u32 %v126, 4294901760
    %v128 = vsub.f32 %v126, %v127
    %v129 = vand.u32 %v128, 4294901760
    %130 = vmatpush.xpose.msra.mxu0 %v129
    %v131 = vand.u32 %v56, 4294901760
    %v132 = vsub.f32 %v56, %v131
    %v133 = vand.u32 %v132, 4294901760
    %v134 = vsub.f32 %v132, %v133
    %v135 = vand.u32 %v134, 4294901760
    %136 = vmatpush.xpose.msra.mxu0 %v135
    %v137 = vand.u32 %v55, 4294901760
    %v138 = vsub.f32 %v55, %v137
    %v139 = vand.u32 %v138, 4294901760
    %v140 = vsub.f32 %v138, %v139
    %v141 = vand.u32 %v140, 4294901760
    %142 = vmatpush.xpose.msra.mxu0 %v141
    %v143 = vand.u32 %v54, 4294901760
    %v144 = vsub.f32 %v54, %v143
    %v145 = vand.u32 %v144, 4294901760
    %v146 = vsub.f32 %v144, %v145
    %v147 = vand.u32 %v146, 4294901760
    %148 = vmatpush.xpose.msra.mxu0 %v147
    %v149 = vand.u32 %v53, 4294901760
    %v150 = vsub.f32 %v53, %v149
    %v151 = vand.u32 %v150, 4294901760
    %v152 = vsub.f32 %v150, %v151
    %v153 = vand.u32 %v152, 4294901760
    %154 = vmatpush.xpose.msra.mxu0 %v153
    %v155 = vand.u32 %v52, 4294901760
    %v156 = vsub.f32 %v52, %v155
    %v157 = vand.u32 %v156, 4294901760
    %v158 = vsub.f32 %v156, %v157
    %v159 = vand.u32 %v158, 4294901760
    %160 = vmatpush.xpose.msra.mxu0 %v159
    %v161 = vand.u32 %v51, 4294901760
    %v162 = vsub.f32 %v51, %v161
    %v163 = vand.u32 %v162, 4294901760
    %v164 = vsub.f32 %v162, %v163
    %v165 = vand.u32 %v164, 4294901760
    %166 = vmatpush.xpose.msra.mxu0 %v165
    %v167 = vand.u32 %v50, 4294901760
    %v168 = vsub.f32 %v50, %v167
    %v169 = vand.u32 %v168, 4294901760
    %v170 = vsub.f32 %v168, %v169
    %v171 = vand.u32 %v170, 4294901760
    %172 = vmatpush.xpose.msra.mxu0 %v171
    %v173 = vand.u32 %v49, 4294901760
    %v174 = vsub.f32 %v49, %v173
    %v175 = vand.u32 %v174, 4294901760
    %v176 = vsub.f32 %v174, %v175
    %v177 = vand.u32 %v176, 4294901760
    %178 = vmatpush.xpose.msra.mxu0 %v177
    %v179 = vand.u32 %v48, 4294901760
    %v180 = vsub.f32 %v48, %v179
    %v181 = vand.u32 %v180, 4294901760
    %v182 = vsub.f32 %v180, %v181
    %v183 = vand.u32 %v182, 4294901760
    %184 = vmatpush.xpose.msra.mxu0 %v183
    %v185 = vand.u32 %v47, 4294901760
    %v186 = vsub.f32 %v47, %v185
    %v187 = vand.u32 %v186, 4294901760
    %v188 = vsub.f32 %v186, %v187
    %v189 = vand.u32 %v188, 4294901760
    %190 = vmatpush.xpose.msra.mxu0 %v189
    %v191 = vand.u32 %v46, 4294901760
    %v192 = vsub.f32 %v46, %v191
    %v193 = vand.u32 %v192, 4294901760
    %v194 = vsub.f32 %v192, %v193
    %v195 = vand.u32 %v194, 4294901760
    %196 = vmatpush.xpose.msra.mxu0 %v195
    %v197 = vand.u32 %v45, 4294901760
    %v198 = vsub.f32 %v45, %v197
    %v199 = vand.u32 %v198, 4294901760
    %v200 = vsub.f32 %v198, %v199
    %v201 = vand.u32 %v200, 4294901760
    %202 = vmatpush.xpose.msra.mxu0 %v201
    %v203 = vand.u32 %v62, 4294901760
    %204 = vmatmul.f32.gmra.mxu0 %v203
    %v205 = vpop.f32.mrf.mxu0
    %v206 = vadd.f32 %v105, %v205
    %207 = vdwg.mxu0
    %v208 = vand.u32 %v60, 4294901760
    %v209 = vsub.f32 %v60, %v208
    %210 = vmatpush.xpose.msra.mxu0 %v209
    %v211 = vand.u32 %v59, 4294901760
    %v212 = vsub.f32 %v59, %v211
    %213 = vmatpush.xpose.msra.mxu0 %v212
    %v214 = vand.u32 %v58, 4294901760
    %v215 = vsub.f32 %v58, %v214
    %216 = vmatpush.xpose.msra.mxu0 %v215
    %v217 = vand.u32 %v57, 4294901760
    %v218 = vsub.f32 %v57, %v217
    %219 = vmatpush.xpose.msra.mxu0 %v218
    %v220 = vand.u32 %v56, 4294901760
    %v221 = vsub.f32 %v56, %v220
    %222 = vmatpush.xpose.msra.mxu0 %v221
    %v223 = vand.u32 %v55, 4294901760
    %v224 = vsub.f32 %v55, %v223
    %225 = vmatpush.xpose.msra.mxu0 %v224
    %v226 = vand.u32 %v54, 4294901760
    %v227 = vsub.f32 %v54, %v226
    %228 = vmatpush.xpose.msra.mxu0 %v227
    %v229 = vand.u32 %v53, 4294901760
    %v230 = vsub.f32 %v53, %v229
    %231 = vmatpush.xpose.msra.mxu0 %v230
    %v232 = vand.u32 %v52, 4294901760
    %v233 = vsub.f32 %v52, %v232
    %234 = vmatpush.xpose.msra.mxu0 %v233
    %v235 = vand.u32 %v51, 4294901760
    %v236 = vsub.f32 %v51, %v235
    %237 = vmatpush.xpose.msra.mxu0 %v236
    %v238 = vand.u32 %v50, 4294901760
    %v239 = vsub.f32 %v50, %v238
    %240 = vmatpush.xpose.msra.mxu0 %v239
    %v241 = vand.u32 %v49, 4294901760
    %v242 = vsub.f32 %v49, %v241
    %243 = vmatpush.xpose.msra.mxu0 %v242
    %v244 = vand.u32 %v48, 4294901760
    %v245 = vsub.f32 %v48, %v244
    %246 = vmatpush.xpose.msra.mxu0 %v245
    %v247 = vand.u32 %v47, 4294901760
    %v248 = vsub.f32 %v47, %v247
    %249 = vmatpush.xpose.msra.mxu0 %v248
    %v250 = vand.u32 %v46, 4294901760
    %v251 = vsub.f32 %v46, %v250
    %252 = vmatpush.xpose.msra.mxu0 %v251
    %v253 = vand.u32 %v45, 4294901760
    %v254 = vsub.f32 %v45, %v253
    %255 = vmatpush.xpose.msra.mxu0 %v254
    %v256 = vand.u32 %v62, 4294901760
    %v257 = vsub.f32 %v62, %v256
    %258 = vmatmul.f32.gmra.mxu0 %v257
    %v259 = vpop.f32.mrf.mxu0
    %v260 = vadd.f32 %v206, %v259
    %261 = vdwg.mxu0
    %v262 = vand.u32 %v60, 4294901760
    %263 = vmatpush.xpose.msra.mxu0 %v262
    %v264 = vand.u32 %v59, 4294901760
    %265 = vmatpush.xpose.msra.mxu0 %v264
    %v266 = vand.u32 %v58, 4294901760
    %267 = vmatpush.xpose.msra.mxu0 %v266
    %v268 = vand.u32 %v57, 4294901760
    %269 = vmatpush.xpose.msra.mxu0 %v268
    %v270 = vand.u32 %v56, 4294901760
    %271 = vmatpush.xpose.msra.mxu0 %v270
    %v272 = vand.u32 %v55, 4294901760
    %273 = vmatpush.xpose.msra.mxu0 %v272
    %v274 = vand.u32 %v54, 4294901760
    %275 = vmatpush.xpose.msra.mxu0 %v274
    %v276 = vand.u32 %v53, 4294901760
    %277 = vmatpush.xpose.msra.mxu0 %v276
    %v278 = vand.u32 %v52, 4294901760
    %279 = vmatpush.xpose.msra.mxu0 %v278
    %v280 = vand.u32 %v51, 4294901760
    %281 = vmatpush.xpose.msra.mxu0 %v280
    %v282 = vand.u32 %v50, 4294901760
    %283 = vmatpush.xpose.msra.mxu0 %v282
    %v284 = vand.u32 %v49, 4294901760
    %285 = vmatpush.xpose.msra.mxu0 %v284
    %v286 = vand.u32 %v48, 4294901760
    %287 = vmatpush.xpose.msra.mxu0 %v286
    %v288 = vand.u32 %v47, 4294901760
    %289 = vmatpush.xpose.msra.mxu0 %v288
    %v290 = vand.u32 %v46, 4294901760
    %291 = vmatpush.xpose.msra.mxu0 %v290
    %v292 = vand.u32 %v45, 4294901760
    %293 = vmatpush.xpose.msra.mxu0 %v292
    %v294 = vand.u32 %v62, 4294901760
    %v295 = vsub.f32 %v62, %v294
    %v296 = vand.u32 %v295, 4294901760
    %297 = vmatmul.f32.gmra.mxu0 %v296
    %v298 = vpop.f32.mrf.mxu0
    %v299 = vadd.f32 %v260, %v298
    %300 = vdwg.mxu0
    %v301 = vand.u32 %v60, 4294901760
    %v302 = vsub.f32 %v60, %v301
    %v303 = vand.u32 %v302, 4294901760
    %304 = vmatpush.xpose.msra.mxu0 %v303
    %v305 = vand.u32 %v59, 4294901760
    %v306 = vsub.f32 %v59, %v305
    %v307 = vand.u32 %v306, 4294901760
    %308 = vmatpush.xpose.msra.mxu0 %v307
    %v309 = vand.u32 %v58, 4294901760
    %v310 = vsub.f32 %v58, %v309
    %v311 = vand.u32 %v310, 4294901760
    %312 = vmatpush.xpose.msra.mxu0 %v311
    %v313 = vand.u32 %v57, 4294901760
    %v314 = vsub.f32 %v57, %v313
    %v315 = vand.u32 %v314, 4294901760
    %316 = vmatpush.xpose.msra.mxu0 %v315
    %v317 = vand.u32 %v56, 4294901760
    %v318 = vsub.f32 %v56, %v317
    %v319 = vand.u32 %v318, 4294901760
    %320 = vmatpush.xpose.msra.mxu0 %v319
    %v321 = vand.u32 %v55, 4294901760
    %v322 = vsub.f32 %v55, %v321
    %v323 = vand.u32 %v322, 4294901760
    %324 = vmatpush.xpose.msra.mxu0 %v323
    %v325 = vand.u32 %v54, 4294901760
    %v326 = vsub.f32 %v54, %v325
    %v327 = vand.u32 %v326, 4294901760
    %328 = vmatpush.xpose.msra.mxu0 %v327
    %v329 = vand.u32 %v53, 4294901760
    %v330 = vsub.f32 %v53, %v329
    %v331 = vand.u32 %v330, 4294901760
    %332 = vmatpush.xpose.msra.mxu0 %v331
    %v333 = vand.u32 %v52, 4294901760
    %v334 = vsub.f32 %v52, %v333
    %v335 = vand.u32 %v334, 4294901760
    %336 = vmatpush.xpose.msra.mxu0 %v335
    %v337 = vand.u32 %v51, 4294901760
    %v338 = vsub.f32 %v51, %v337
    %v339 = vand.u32 %v338, 4294901760
    %340 = vmatpush.xpose.msra.mxu0 %v339
    %v341 = vand.u32 %v50, 4294901760
    %v342 = vsub.f32 %v50, %v341
    %v343 = vand.u32 %v342, 4294901760
    %344 = vmatpush.xpose.msra.mxu0 %v343
    %v345 = vand.u32 %v49, 4294901760
    %v346 = vsub.f32 %v49, %v345
    %v347 = vand.u32 %v346, 4294901760
    %348 = vmatpush.xpose.msra.mxu0 %v347
    %v349 = vand.u32 %v48, 4294901760
    %v350 = vsub.f32 %v48, %v349
    %v351 = vand.u32 %v350, 4294901760
    %352 = vmatpush.xpose.msra.mxu0 %v351
    %v353 = vand.u32 %v47, 4294901760
    %v354 = vsub.f32 %v47, %v353
    %v355 = vand.u32 %v354, 4294901760
    %356 = vmatpush.xpose.msra.mxu0 %v355
    %v357 = vand.u32 %v46, 4294901760
    %v358 = vsub.f32 %v46, %v357
    %v359 = vand.u32 %v358, 4294901760
    %360 = vmatpush.xpose.msra.mxu0 %v359
    %v361 = vand.u32 %v45, 4294901760
    %v362 = vsub.f32 %v45, %v361
    %v363 = vand.u32 %v362, 4294901760
    %364 = vmatpush.xpose.msra.mxu0 %v363
    %v365 = vand.u32 %v62, 4294901760
    %366 = vmatmul.f32.gmra.mxu0 %v365
    %v367 = vpop.f32.mrf.mxu0
    %v368 = vadd.f32 %v299, %v367
    %369 = vdwg.mxu0
    %v370 = vand.u32 %v60, 4294901760
    %371 = vmatpush.xpose.msra.mxu0 %v370
    %v372 = vand.u32 %v59, 4294901760
    %373 = vmatpush.xpose.msra.mxu0 %v372
    %v374 = vand.u32 %v58, 4294901760
    %375 = vmatpush.xpose.msra.mxu0 %v374
    %v376 = vand.u32 %v57, 4294901760
    %377 = vmatpush.xpose.msra.mxu0 %v376
    %v378 = vand.u32 %v56, 4294901760
    %379 = vmatpush.xpose.msra.mxu0 %v378
    %v380 = vand.u32 %v55, 4294901760
    %381 = vmatpush.xpose.msra.mxu0 %v380
    %v382 = vand.u32 %v54, 4294901760
    %383 = vmatpush.xpose.msra.mxu0 %v382
    %v384 = vand.u32 %v53, 4294901760
    %385 = vmatpush.xpose.msra.mxu0 %v384
    %v386 = vand.u32 %v52, 4294901760
    %387 = vmatpush.xpose.msra.mxu0 %v386
    %v388 = vand.u32 %v51, 4294901760
    %389 = vmatpush.xpose.msra.mxu0 %v388
    %v390 = vand.u32 %v50, 4294901760
    %391 = vmatpush.xpose.msra.mxu0 %v390
    %v392 = vand.u32 %v49, 4294901760
    %393 = vmatpush.xpose.msra.mxu0 %v392
    %v394 = vand.u32 %v48, 4294901760
    %395 = vmatpush.xpose.msra.mxu0 %v394
    %v396 = vand.u32 %v47, 4294901760
    %397 = vmatpush.xpose.msra.mxu0 %v396
    %v398 = vand.u32 %v46, 4294901760
    %399 = vmatpush.xpose.msra.mxu0 %v398
    %v400 = vand.u32 %v45, 4294901760
    %401 = vmatpush.xpose.msra.mxu0 %v400
    %v402 = vand.u32 %v62, 4294901760
    %403 = vmatmul.f32.gmra.mxu0 %v402
    %v404 = vpop.f32.mrf.mxu0
    %v405 = vadd.f32 %v368, %v404
    %406 = vdwg.mxu0
    %v407 = vmax.f32 %v405, 0.0
    %408 = vst [vmem:[#allocation7] sm:$0xff] %v407
    %v409 = vld [vmem:[#allocation2 + $0x8] sm:$0xff]
    %v410 = vand.u32 %v60, 4294901760
    %411 = vmatpush.xpose.msra.mxu0 %v410
    %v412 = vand.u32 %v59, 4294901760
    %413 = vmatpush.xpose.msra.mxu0 %v412
    %v414 = vand.u32 %v58, 4294901760
    %415 = vmatpush.xpose.msra.mxu0 %v414
    %v416 = vand.u32 %v57, 4294901760
    %417 = vmatpush.xpose.msra.mxu0 %v416
    %v418 = vand.u32 %v56, 4294901760
    %419 = vmatpush.xpose.msra.mxu0 %v418
    %v420 = vand.u32 %v55, 4294901760
    %421 = vmatpush.xpose.msra.mxu0 %v420
    %v422 = vand.u32 %v54, 4294901760
    %423 = vmatpush.xpose.msra.mxu0 %v422
    %v424 = vand.u32 %v53, 4294901760
    %425 = vmatpush.xpose.msra.mxu0 %v424
    %v426 = vand.u32 %v52, 4294901760
    %427 = vmatpush.xpose.msra.mxu0 %v426
    %v428 = vand.u32 %v51, 4294901760
    %429 = vmatpush.xpose.msra.mxu0 %v428
    %v430 = vand.u32 %v50, 4294901760
    %431 = vmatpush.xpose.msra.mxu0 %v430
    %v432 = vand.u32 %v49, 4294901760
    %433 = vmatpush.xpose.msra.mxu0 %v432
    %v434 = vand.u32 %v48, 4294901760
    %435 = vmatpush.xpose.msra.mxu0 %v434
    %v436 = vand.u32 %v47, 4294901760
    %437 = vmatpush.xpose.msra.mxu0 %v436
    %v438 = vand.u32 %v46, 4294901760
    %439 = vmatpush.xpose.msra.mxu0 %v438
    %v440 = vand.u32 %v45, 4294901760
    %441 = vmatpush.xpose.msra.mxu0 %v440
    %v442 = vand.u32 %v409, 4294901760
    %v443 = vsub.f32 %v409, %v442
    %v444 = vand.u32 %v443, 4294901760
    %v445 = vsub.f32 %v443, %v444
    %v446 = vand.u32 %v445, 4294901760
    %447 = vmatmul.f32.gmra.mxu0 %v446
    %v448 = vpop.f32.mrf.mxu0
    %v449 = vadd.f32 %v64, %v448
    %450 = vdwg.mxu0
    %v451 = vand.u32 %v60, 4294901760
    %v452 = vsub.f32 %v60, %v451
    %v453 = vand.u32 %v452, 4294901760
    %v454 = vsub.f32 %v452, %v453
    %v455 = vand.u32 %v454, 4294901760
    %456 = vmatpush.xpose.msra.mxu0 %v455
    %v457 = vand.u32 %v59, 4294901760
    %v458 = vsub.f32 %v59, %v457
    %v459 = vand.u32 %v458, 4294901760
    %v460 = vsub.f32 %v458, %v459
    %v461 = vand.u32 %v460, 4294901760
    %462 = vmatpush.xpose.msra.mxu0 %v461
    %v463 = vand.u32 %v58, 4294901760
    %v464 = vsub.f32 %v58, %v463
    %v465 = vand.u32 %v464, 4294901760
    %v466 = vsub.f32 %v464, %v465
    %v467 = vand.u32 %v466, 4294901760
    %468 = vmatpush.xpose.msra.mxu0 %v467
    %v469 = vand.u32 %v57, 4294901760
    %v470 = vsub.f32 %v57, %v469
    %v471 = vand.u32 %v470, 4294901760
    %v472 = vsub.f32 %v470, %v471
    %v473 = vand.u32 %v472, 4294901760
    %474 = vmatpush.xpose.msra.mxu0 %v473
    %v475 = vand.u32 %v56, 4294901760
    %v476 = vsub.f32 %v56, %v475
    %v477 = vand.u32 %v476, 4294901760
    %v478 = vsub.f32 %v476, %v477
    %v479 = vand.u32 %v478, 4294901760
    %480 = vmatpush.xpose.msra.mxu0 %v479
    %v481 = vand.u32 %v55, 4294901760
    %v482 = vsub.f32 %v55, %v481
    %v483 = vand.u32 %v482, 4294901760
    %v484 = vsub.f32 %v482, %v483
    %v485 = vand.u32 %v484, 4294901760
    %486 = vmatpush.xpose.msra.mxu0 %v485
    %v487 = vand.u32 %v54, 4294901760
    %v488 = vsub.f32 %v54, %v487
    %v489 = vand.u32 %v488, 4294901760
    %v490 = vsub.f32 %v488, %v489
    %v491 = vand.u32 %v490, 4294901760
    %492 = vmatpush.xpose.msra.mxu0 %v491
    %v493 = vand.u32 %v53, 4294901760
    %v494 = vsub.f32 %v53, %v493
    %v495 = vand.u32 %v494, 4294901760
    %v496 = vsub.f32 %v494, %v495
    %v497 = vand.u32 %v496, 4294901760
    %498 = vmatpush.xpose.msra.mxu0 %v497
    %v499 = vand.u32 %v52, 4294901760
    %v500 = vsub.f32 %v52, %v499
    %v501 = vand.u32 %v500, 4294901760
    %v502 = vsub.f32 %v500, %v501
    %v503 = vand.u32 %v502, 4294901760
    %504 = vmatpush.xpose.msra.mxu0 %v503
    %v505 = vand.u32 %v51, 4294901760
    %v506 = vsub.f32 %v51, %v505
    %v507 = vand.u32 %v506, 4294901760
    %v508 = vsub.f32 %v506, %v507
    %v509 = vand.u32 %v508, 4294901760
    %510 = vmatpush.xpose.msra.mxu0 %v509
    %v511 = vand.u32 %v50, 4294901760
    %v512 = vsub.f32 %v50, %v511
    %v513 = vand.u32 %v512, 4294901760
    %v514 = vsub.f32 %v512, %v513
    %v515 = vand.u32 %v514, 4294901760
    %516 = vmatpush.xpose.msra.mxu0 %v515
    %v517 = vand.u32 %v49, 4294901760
    %v518 = vsub.f32 %v49, %v517
    %v519 = vand.u32 %v518, 4294901760
    %v520 = vsub.f32 %v518, %v519
    %v521 = vand.u32 %v520, 4294901760
    %522 = vmatpush.xpose.msra.mxu0 %v521
    %v523 = vand.u32 %v48, 4294901760
    %v524 = vsub.f32 %v48, %v523
    %v525 = vand.u32 %v524, 4294901760
    %v526 = vsub.f32 %v524, %v525
    %v527 = vand.u32 %v526, 4294901760
    %528 = vmatpush.xpose.msra.mxu0 %v527
    %v529 = vand.u32 %v47, 4294901760
    %v530 = vsub.f32 %v47, %v529
    %v531 = vand.u32 %v530, 4294901760
    %v532 = vsub.f32 %v530, %v531
    %v533 = vand.u32 %v532, 4294901760
    %534 = vmatpush.xpose.msra.mxu0 %v533
    %v535 = vand.u32 %v46, 4294901760
    %v536 = vsub.f32 %v46, %v535
    %v537 = vand.u32 %v536, 4294901760
    %v538 = vsub.f32 %v536, %v537
    %v539 = vand.u32 %v538, 4294901760
    %540 = vmatpush.xpose.msra.mxu0 %v539
    %v541 = vand.u32 %v45, 4294901760
    %v542 = vsub.f32 %v45, %v541
    %v543 = vand.u32 %v542, 4294901760
    %v544 = vsub.f32 %v542, %v543
    %v545 = vand.u32 %v544, 4294901760
    %546 = vmatpush.xpose.msra.mxu0 %v545
    %v547 = vand.u32 %v409, 4294901760
    %548 = vmatmul.f32.gmra.mxu0 %v547
    %v549 = vpop.f32.mrf.mxu0
    %v550 = vadd.f32 %v449, %v549
    %551 = vdwg.mxu0
    %v552 = vand.u32 %v60, 4294901760
    %v553 = vsub.f32 %v60, %v552
    %554 = vmatpush.xpose.msra.mxu0 %v553
    %v555 = vand.u32 %v59, 4294901760
    %v556 = vsub.f32 %v59, %v555
    %557 = vmatpush.xpose.msra.mxu0 %v556
    %v558 = vand.u32 %v58, 4294901760
    %v559 = vsub.f32 %v58, %v558
    %560 = vmatpush.xpose.msra.mxu0 %v559
    %v561 = vand.u32 %v57, 4294901760
    %v562 = vsub.f32 %v57, %v561
    %563 = vmatpush.xpose.msra.mxu0 %v562
    %v564 = vand.u32 %v56, 4294901760
    %v565 = vsub.f32 %v56, %v564
    %566 = vmatpush.xpose.msra.mxu0 %v565
    %v567 = vand.u32 %v55, 4294901760
    %v568 = vsub.f32 %v55, %v567
    %569 = vmatpush.xpose.msra.mxu0 %v568
    %v570 = vand.u32 %v54, 4294901760
    %v571 = vsub.f32 %v54, %v570
    %572 = vmatpush.xpose.msra.mxu0 %v571
    %v573 = vand.u32 %v53, 4294901760
    %v574 = vsub.f32 %v53, %v573
    %575 = vmatpush.xpose.msra.mxu0 %v574
    %v576 = vand.u32 %v52, 4294901760
    %v577 = vsub.f32 %v52, %v576
    %578 = vmatpush.xpose.msra.mxu0 %v577
    %v579 = vand.u32 %v51, 4294901760
    %v580 = vsub.f32 %v51, %v579
    %581 = vmatpush.xpose.msra.mxu0 %v580
    %v582 = vand.u32 %v50, 4294901760
    %v583 = vsub.f32 %v50, %v582
    %584 = vmatpush.xpose.msra.mxu0 %v583
    %v585 = vand.u32 %v49, 4294901760
    %v586 = vsub.f32 %v49, %v585
    %587 = vmatpush.xpose.msra.mxu0 %v586
    %v588 = vand.u32 %v48, 4294901760
    %v589 = vsub.f32 %v48, %v588
    %590 = vmatpush.xpose.msra.mxu0 %v589
    %v591 = vand.u32 %v47, 4294901760
    %v592 = vsub.f32 %v47, %v591
    %593 = vmatpush.xpose.msra.mxu0 %v592
    %v594 = vand.u32 %v46, 4294901760
    %v595 = vsub.f32 %v46, %v594
    %596 = vmatpush.xpose.msra.mxu0 %v595
    %v597 = vand.u32 %v45, 4294901760
    %v598 = vsub.f32 %v45, %v597
    %599 = vmatpush.xpose.msra.mxu0 %v598
    %v600 = vand.u32 %v409, 4294901760
    %v601 = vsub.f32 %v409, %v600
    %602 = vmatmul.f32.gmra.mxu0 %v601
    %v603 = vpop.f32.mrf.mxu0
    %v604 = vadd.f32 %v550, %v603
    %605 = vdwg.mxu0
    %v606 = vand.u32 %v60, 4294901760
    %607 = vmatpush.xpose.msra.mxu0 %v606
    %v608 = vand.u32 %v59, 4294901760
    %609 = vmatpush.xpose.msra.mxu0 %v608
    %v610 = vand.u32 %v58, 4294901760
    %611 = vmatpush.xpose.msra.mxu0 %v610
    %v612 = vand.u32 %v57, 4294901760
    %613 = vmatpush.xpose.msra.mxu0 %v612
    %v614 = vand.u32 %v56, 4294901760
    %615 = vmatpush.xpose.msra.mxu0 %v614
    %v616 = vand.u32 %v55, 4294901760
    %617 = vmatpush.xpose.msra.mxu0 %v616
    %v618 = vand.u32 %v54, 4294901760
    %619 = vmatpush.xpose.msra.mxu0 %v618
    %v620 = vand.u32 %v53, 4294901760
    %621 = vmatpush.xpose.msra.mxu0 %v620
    %v622 = vand.u32 %v52, 4294901760
    %623 = vmatpush.xpose.msra.mxu0 %v622
    %v624 = vand.u32 %v51, 4294901760
    %625 = vmatpush.xpose.msra.mxu0 %v624
    %v626 = vand.u32 %v50, 4294901760
    %627 = vmatpush.xpose.msra.mxu0 %v626
    %v628 = vand.u32 %v49, 4294901760
    %629 = vmatpush.xpose.msra.mxu0 %v628
    %v630 = vand.u32 %v48, 4294901760
    %631 = vmatpush.xpose.msra.mxu0 %v630
    %v632 = vand.u32 %v47, 4294901760
    %633 = vmatpush.xpose.msra.mxu0 %v632
    %v634 = vand.u32 %v46, 4294901760
    %635 = vmatpush.xpose.msra.mxu0 %v634
    %v636 = vand.u32 %v45, 4294901760
    %637 = vmatpush.xpose.msra.mxu0 %v636
    %v638 = vand.u32 %v409, 4294901760
    %v639 = vsub.f32 %v409, %v638
    %v640 = vand.u32 %v639, 4294901760
    %641 = vmatmul.f32.gmra.mxu0 %v640
    %v642 = vpop.f32.mrf.mxu0
    %v643 = vadd.f32 %v604, %v642
    %644 = vdwg.mxu0
    %v645 = vand.u32 %v60, 4294901760
    %v646 = vsub.f32 %v60, %v645
    %v647 = vand.u32 %v646, 4294901760
    %648 = vmatpush.xpose.msra.mxu0 %v647
    %v649 = vand.u32 %v59, 4294901760
    %v650 = vsub.f32 %v59, %v649
    %v651 = vand.u32 %v650, 4294901760
    %652 = vmatpush.xpose.msra.mxu0 %v651
    %v653 = vand.u32 %v58, 4294901760
    %v654 = vsub.f32 %v58, %v653
    %v655 = vand.u32 %v654, 4294901760
    %656 = vmatpush.xpose.msra.mxu0 %v655
    %v657 = vand.u32 %v57, 4294901760
    %v658 = vsub.f32 %v57, %v657
    %v659 = vand.u32 %v658, 4294901760
    %660 = vmatpush.xpose.msra.mxu0 %v659
    %v661 = vand.u32 %v56, 4294901760
    %v662 = vsub.f32 %v56, %v661
    %v663 = vand.u32 %v662, 4294901760
    %664 = vmatpush.xpose.msra.mxu0 %v663
    %v665 = vand.u32 %v55, 4294901760
    %v666 = vsub.f32 %v55, %v665
    %v667 = vand.u32 %v666, 4294901760
    %668 = vmatpush.xpose.msra.mxu0 %v667
    %v669 = vand.u32 %v54, 4294901760
    %v670 = vsub.f32 %v54, %v669
    %v671 = vand.u32 %v670, 4294901760
    %672 = vmatpush.xpose.msra.mxu0 %v671
    %v673 = vand.u32 %v53, 4294901760
    %v674 = vsub.f32 %v53, %v673
    %v675 = vand.u32 %v674, 4294901760
    %676 = vmatpush.xpose.msra.mxu0 %v675
    %v677 = vand.u32 %v52, 4294901760
    %v678 = vsub.f32 %v52, %v677
    %v679 = vand.u32 %v678, 4294901760
    %680 = vmatpush.xpose.msra.mxu0 %v679
    %v681 = vand.u32 %v51, 4294901760
    %v682 = vsub.f32 %v51, %v681
    %v683 = vand.u32 %v682, 4294901760
    %684 = vmatpush.xpose.msra.mxu0 %v683
    %v685 = vand.u32 %v50, 4294901760
    %v686 = vsub.f32 %v50, %v685
    %v687 = vand.u32 %v686, 4294901760
    %688 = vmatpush.xpose.msra.mxu0 %v687
    %v689 = vand.u32 %v49, 4294901760
    %v690 = vsub.f32 %v49, %v689
    %v691 = vand.u32 %v690, 4294901760
    %692 = vmatpush.xpose.msra.mxu0 %v691
    %v693 = vand.u32 %v48, 4294901760
    %v694 = vsub.f32 %v48, %v693
    %v695 = vand.u32 %v694, 4294901760
    %696 = vmatpush.xpose.msra.mxu0 %v695
    %v697 = vand.u32 %v47, 4294901760
    %v698 = vsub.f32 %v47, %v697
    %v699 = vand.u32 %v698, 4294901760
    %700 = vmatpush.xpose.msra.mxu0 %v699
    %v701 = vand.u32 %v46, 4294901760
    %v702 = vsub.f32 %v46, %v701
    %v703 = vand.u32 %v702, 4294901760
    %704 = vmatpush.xpose.msra.mxu0 %v703
    %v705 = vand.u32 %v45, 4294901760
    %v706 = vsub.f32 %v45, %v705
    %v707 = vand.u32 %v706, 4294901760
    %708 = vmatpush.xpose.msra.mxu0 %v707
    %v709 = vand.u32 %v409, 4294901760
    %710 = vmatmul.f32.gmra.mxu0 %v709
    %v711 = vpop.f32.mrf.mxu0
    %v712 = vadd.f32 %v643, %v711
    %713 = vdwg.mxu0
    %v714 = vand.u32 %v60, 4294901760
    %715 = vmatpush.xpose.msra.mxu0 %v714
    %v716 = vand.u32 %v59, 4294901760
    %717 = vmatpush.xpose.msra.mxu0 %v716
    %v718 = vand.u32 %v58, 4294901760
    %719 = vmatpush.xpose.msra.mxu0 %v718
    %v720 = vand.u32 %v57, 4294901760
    %721 = vmatpush.xpose.msra.mxu0 %v720
    %v722 = vand.u32 %v56, 4294901760
    %723 = vmatpush.xpose.msra.mxu0 %v722
    %v724 = vand.u32 %v55, 4294901760
    %725 = vmatpush.xpose.msra.mxu0 %v724
    %v726 = vand.u32 %v54, 4294901760
    %727 = vmatpush.xpose.msra.mxu0 %v726
    %v728 = vand.u32 %v53, 4294901760
    %729 = vmatpush.xpose.msra.mxu0 %v728
    %v730 = vand.u32 %v52, 4294901760
    %731 = vmatpush.xpose.msra.mxu0 %v730
    %v732 = vand.u32 %v51, 4294901760
    %733 = vmatpush.xpose.msra.mxu0 %v732
    %v734 = vand.u32 %v50, 4294901760
    %735 = vmatpush.xpose.msra.mxu0 %v734
    %v736 = vand.u32 %v49, 4294901760
    %737 = vmatpush.xpose.msra.mxu0 %v736
    %v738 = vand.u32 %v48, 4294901760
    %739 = vmatpush.xpose.msra.mxu0 %v738
    %v740 = vand.u32 %v47, 4294901760
    %741 = vmatpush.xpose.msra.mxu0 %v740
    %v742 = vand.u32 %v46, 4294901760
    %743 = vmatpush.xpose.msra.mxu0 %v742
    %v744 = vand.u32 %v45, 4294901760
    %745 = vmatpush.xpose.msra.mxu0 %v744
    %v746 = vand.u32 %v409, 4294901760
    %747 = vmatmul.f32.gmra.mxu0 %v746
    %v748 = vpop.f32.mrf.mxu0
    %v749 = vadd.f32 %v712, %v748
    %750 = vdwg.mxu0
    %v751 = vmax.f32 %v749, 0.0
    %752 = vst [vmem:[#allocation7 + $0x8] sm:$0xff] %v751
    // Predicated region
    $region22: #{tpu_custom_call.1} parent=1 // pred_check
      _
    $region23: #{tpu_custom_call.1} parent=1 // pred_check_branch
      %754 = sbr.rel (0) target = $region25
    $region24: #{tpu_custom_call.1} parent=1 // pred_region
      %756 = vsyncadd [#allocation4], 0
      %s758 = sshll.u32 [#allocation7], 4
      %s759 = int_to_ptr.vmem [resolvable:$true] %s758
      %s760 = sshll.u32 %s3, 4
      %s761 = int_to_ptr.hbm [resolvable:$true] %s760
      %763 = dma.vmem_to_hbm [thread:$0]  %s759, 256, %s761, [#allocation4]
    $region25: #{tpu_custom_call.1} parent=1 // pred_fallthru
      _
    // Predicated region
    $region26: #{tpu_custom_call.1} parent=1 // pred_check
      _
    $region27: #{tpu_custom_call.1} parent=1 // pred_check_branch
      %765 = sbr.rel (0) target = $region29
    $region28: #{tpu_custom_call.1} parent=1 // pred_region
      %767 = dma.done [#allocation4], 256
    $region29: #{tpu_custom_call.1} parent=1 // pred_fallthru
      _
    %768 = vsyncpa [#allocation3], 1
    %769 = vsyncpa [#allocation6], 1
    %770 = vsyncpa [#allocation4], 1

</llo_original>
